<compile_context>
chip_gen: v7x
topology: tpu7x:2x2x1
jax: 0.10.0
libtpu: 0.0.40
codegen_flags: <defaults>
</compile_context>

<pallas_src>
import functools

import jax
import jax.numpy as jnp
from jax import lax
from jax.experimental import pallas as pl
from jax.experimental.pallas import tpu as pltpu


def _round_up(n, m):
    return ((n + m - 1) // m) * m


def policy_net_kernel(x_ref, w1_ref, b1_ref, w2_ref, b2_ref, out_ref):
    # x: (TB, 9) f32; w1: (32, 9); b1: (1, 32) f32; w2: (9, 32); b2: (1, 9) f32.
    xb = x_ref[...].astype(w1_ref.dtype)                      # in-kernel cast for the MXU
    # h = x @ W1^T -> (TB, 32); MXU with f32 accumulation.
    h = lax.dot_general(xb, w1_ref[...],
                        dimension_numbers=(((1,), (1,)), ((), ())),
                        preferred_element_type=jnp.float32)
    h = jnp.maximum(h + b1_ref[...], 0.0)                     # bias + ReLU in f32 (VPU)
    # logits = h @ W2^T -> (TB, 9); single cast back to the MXU dtype, no extra temps.
    logits = lax.dot_general(h.astype(w2_ref.dtype), w2_ref[...],
                             dimension_numbers=(((1,), (1,)), ((), ())),
                             preferred_element_type=jnp.float32)
    out_ref[...] = (logits + b2_ref[...]).astype(out_ref.dtype)
    # TODO(synk): the module spec returns raw logits; fusing the consumer's softmax /
    # argmax here would delete the (B, 9) logits writeback entirely (EUP/XLU slots are
    # free in this HBM-bound kernel), but that would change the forward-pass contract.


def _choose_batch_tile(B, tb_cap):
    """Pick (TB rows per grid step, number of grid steps)."""
    if B <= tb_cap:
        if B >= 2048:
            # Two tiles so both v7x TensorCores get work (no-op on v5e/v6e).
            TB = _round_up(pl.cdiv(B, 2), 8)
        else:
            TB = B          # single exact tile; block dim == full array dim is always legal
    else:
        TB = tb_cap          # multiple of 8; ragged last block handled by Pallas masking
    return TB, pl.cdiv(B, TB)


@functools.partial(jax.jit, static_argnames=("use_bf16", "logits_dtype", "tb_cap"))
def policy_net_forward(x, w1, b1, w2, b2, *, use_bf16=True,
                       logits_dtype=jnp.float32, tb_cap=8192):
    """x: (B, 9); w1: (32, 9); b1: (32,); w2: (9, 32); b2: (9,) — PyTorch nn.Linear layouts."""
    B, in_dim = x.shape
    hid_dim = w1.shape[0]
    out_dim = w2.shape[0]
    assert tb_cap % 8 == 0

    compute_dtype = jnp.bfloat16 if use_bf16 else jnp.float32
    TB, n_tiles = _choose_batch_tile(B, tb_cap)

    w1c = w1.astype(compute_dtype)                            # (32, 9)  — tiny, one-off cast
    w2c = w2.astype(compute_dtype)                            # (9, 32)
    b1c = b1.reshape(1, hid_dim).astype(jnp.float32)          # (1, 32)
    b2c = b2.reshape(1, out_dim).astype(jnp.float32)          # (1, 9)

    out = pl.pallas_call(
        policy_net_kernel,
        out_shape=jax.ShapeDtypeStruct((B, out_dim), logits_dtype),
        grid=(n_tiles,),
        in_specs=[
            pl.BlockSpec((TB, in_dim), lambda i: (i, 0)),       # x: tiled over batch rows
            pl.BlockSpec((hid_dim, in_dim), lambda i: (0, 0)),  # W1: VMEM-resident
            pl.BlockSpec((1, hid_dim), lambda i: (0, 0)),       # b1
            pl.BlockSpec((out_dim, hid_dim), lambda i: (0, 0)), # W2
            pl.BlockSpec((1, out_dim), lambda i: (0, 0)),       # b2
        ],
        out_specs=pl.BlockSpec((TB, out_dim), lambda i: (i, 0)),
        compiler_params=pltpu.CompilerParams(
            dimension_semantics=("parallel",),        # batch tiles split across v7x TCs
            vmem_limit_bytes=48 * 1024 * 1024,        # > v5e's 16 MiB default; < v7x physical
        ),
    )(x, w1c, b1c, w2c, b2c)

    return out


def policy_net_reference(x, w1, b1, w2, b2, use_bf16=True):
    # Pure-JAX reference mirroring the kernel's precision choices (bf16 MXU, f32 accum).
    cdt = jnp.bfloat16 if use_bf16 else jnp.float32
    xc = x.astype(cdt)
    h = lax.dot_general(xc, w1.astype(cdt), (((1,), (1,)), ((), ())),
                        preferred_element_type=jnp.float32) + b1
    h = jnp.maximum(h, 0.0)
    logits = lax.dot_general(h.astype(cdt), w2.astype(cdt), (((1,), (1,)), ((), ())),
                             preferred_element_type=jnp.float32) + b2
    return logits


def init_params(key):
    # nn.Linear default init: U(-1/sqrt(fan_in), 1/sqrt(fan_in)), weights (out, in).
    k1, k2, k3, k4 = jax.random.split(key, 4)
    bound1 = 1.0 / jnp.sqrt(9.0)
    bound2 = 1.0 / jnp.sqrt(32.0)
    w1 = jax.random.uniform(k1, (32, 9), jnp.float32, -bound1, bound1)
    b1 = jax.random.uniform(k2, (32,), jnp.float32, -bound1, bound1)
    w2 = jax.random.uniform(k3, (9, 32), jnp.float32, -bound2, bound2)
    b2 = jax.random.uniform(k4, (9,), jnp.float32, -bound2, bound2)
    return w1, b1, w2, b2


if __name__ == "__main__":
    key = jax.random.PRNGKey(0)
    k_in, k_in2, k_param = jax.random.split(key, 3)
    w1, b1, w2, b2 = init_params(k_param)

    # Small shape implied by the module: a batch of 8 boards with 9 cells each.
    x = jax.random.normal(k_in, (8, 9), jnp.float32)
    logits = policy_net_forward(x, w1, b1, w2, b2)
    jax.block_until_ready(logits)
    ref = policy_net_reference(x, w1, b1, w2, b2)
    assert logits.shape == (8, 9) and logits.dtype == jnp.float32
    assert jnp.allclose(logits, ref, atol=1e-2, rtol=1e-2), "mismatch vs reference (B=8)"

    # Second check: batch not a multiple of 8 (still a single exact tile, TB == B).
    x2 = jax.random.normal(k_in2, (300, 9), jnp.float32)
    logits2 = policy_net_forward(x2, w1, b1, w2, b2)
    jax.block_until_ready(logits2)
    ref2 = policy_net_reference(x2, w1, b1, w2, b2)
    assert logits2.shape == (300, 9)
    assert jnp.allclose(logits2, ref2, atol=1e-2, rtol=1e-2), "mismatch vs reference (B=300)"

    print("KERNEL_OK")
</pallas_src>

<mosaic_0001>
module attributes {stable_mosaic.version = 11 : i64} {
  func.func @policy_net_kernel(%arg0: i32, %arg1: memref<8x9xf32, #tpu.memory_space<vmem>>, %arg2: memref<32x9xbf16, #tpu.memory_space<vmem>>, %arg3: memref<1x32xf32, #tpu.memory_space<vmem>>, %arg4: memref<9x32xbf16, #tpu.memory_space<vmem>>, %arg5: memref<1x9xf32, #tpu.memory_space<vmem>>, %arg6: memref<8x9xf32, #tpu.memory_space<vmem>>) attributes {dimension_semantics = [#tpu.dimension_semantics<parallel>], iteration_bounds = array<i64: 1>, scalar_prefetch = 0 : i64, scratch_operands = 0 : i64, tpu.core_type = #tpu.core_type<tc>, window_params = [{transform_indices = @transform_0, window_bounds = array<i64: 8, 9>}, {pipeline_mode = #tpu.pipeline_mode<synchronous>, transform_indices = @transform_1, window_bounds = array<i64: 32, 9>}, {pipeline_mode = #tpu.pipeline_mode<synchronous>, transform_indices = @transform_2, window_bounds = array<i64: 1, 32>}, {pipeline_mode = #tpu.pipeline_mode<synchronous>, transform_indices = @transform_3, window_bounds = array<i64: 9, 32>}, {pipeline_mode = #tpu.pipeline_mode<synchronous>, transform_indices = @transform_4, window_bounds = array<i64: 1, 9>}, {transform_indices = @transform_5, window_bounds = array<i64: 8, 9>}]} {
    %c0 = arith.constant 0 : index
    %c0_0 = arith.constant 0 : index
    %0 = vector.load %arg1[%c0, %c0_0] : memref<8x9xf32, #tpu.memory_space<vmem>>, vector<8x9xf32>
    %1 = arith.truncf %0 : vector<8x9xf32> to vector<8x9xbf16>
    %c0_1 = arith.constant 0 : index
    %c0_2 = arith.constant 0 : index
    %2 = vector.load %arg2[%c0_1, %c0_2] : memref<32x9xbf16, #tpu.memory_space<vmem>>, vector<32x9xbf16>
    %cst = arith.constant dense<0.000000e+00> : vector<8x32xf32>
    %3 = tpu.matmul %1, %2, %cst {dimension_numbers = #tpu.dot_dimension_numbers<[1], [1], [0], [0], [0, 0, 1, 0], [], []>} : vector<8x9xbf16>, vector<32x9xbf16>, vector<8x32xf32> -> vector<8x32xf32>
    %c0_3 = arith.constant 0 : index
    %c0_4 = arith.constant 0 : index
    %4 = vector.load %arg3[%c0_3, %c0_4] : memref<1x32xf32, #tpu.memory_space<vmem>>, vector<1x32xf32>
    %5 = vector.broadcast %4 : vector<1x32xf32> to vector<8x32xf32>
    %6 = arith.addf %3, %5 : vector<8x32xf32>
    %cst_5 = arith.constant 0.000000e+00 : f32
    %7 = vector.broadcast %cst_5 : f32 to vector<8x32xf32>
    %8 = arith.maximumf %6, %7 : vector<8x32xf32>
    %9 = arith.truncf %8 : vector<8x32xf32> to vector<8x32xbf16>
    %c0_6 = arith.constant 0 : index
    %c0_7 = arith.constant 0 : index
    %10 = vector.load %arg4[%c0_6, %c0_7] : memref<9x32xbf16, #tpu.memory_space<vmem>>, vector<9x32xbf16>
    %cst_8 = arith.constant dense<0.000000e+00> : vector<8x9xf32>
    %11 = tpu.matmul %9, %10, %cst_8 {dimension_numbers = #tpu.dot_dimension_numbers<[1], [1], [0], [0], [0, 0, 1, 0], [], []>} : vector<8x32xbf16>, vector<9x32xbf16>, vector<8x9xf32> -> vector<8x9xf32>
    %c0_9 = arith.constant 0 : index
    %c0_10 = arith.constant 0 : index
    %12 = vector.load %arg5[%c0_9, %c0_10] : memref<1x9xf32, #tpu.memory_space<vmem>>, vector<1x9xf32>
    %13 = vector.broadcast %12 : vector<1x9xf32> to vector<8x9xf32>
    %14 = arith.addf %11, %13 : vector<8x9xf32>
    %c0_11 = arith.constant 0 : index
    %c0_12 = arith.constant 0 : index
    %15 = vector.load %arg6[%c0_11, %c0_12] : memref<8x9xf32, #tpu.memory_space<vmem>>, vector<8x9xf32>
    tpu.vector_store %arg6[%c0_11, %c0_12], %14 {strides = array<i32>} : memref<8x9xf32, #tpu.memory_space<vmem>>, vector<8x9xf32>,
    return
  }
  func.func @transform_0(%arg0: i32) -> (i32, i32) {
    %c0_i32 = arith.constant 0 : i32
    %c0_i32_0 = arith.constant 0 : i32
    return %arg0, %c0_i32 : i32, i32
  }
  func.func @transform_1(%arg0: i32) -> (i32, i32) {
    %c0_i32 = arith.constant 0 : i32
    %c0_i32_0 = arith.constant 0 : i32
    %c0_i32_1 = arith.constant 0 : i32
    return %c0_i32, %c0_i32_0 : i32, i32
  }
  func.func @transform_2(%arg0: i32) -> (i32, i32) {
    %c0_i32 = arith.constant 0 : i32
    %c0_i32_0 = arith.constant 0 : i32
    %c0_i32_1 = arith.constant 0 : i32
    return %c0_i32, %c0_i32_0 : i32, i32
  }
  func.func @transform_3(%arg0: i32) -> (i32, i32) {
    %c0_i32 = arith.constant 0 : i32
    %c0_i32_0 = arith.constant 0 : i32
    %c0_i32_1 = arith.constant 0 : i32
    return %c0_i32, %c0_i32_0 : i32, i32
  }
  func.func @transform_4(%arg0: i32) -> (i32, i32) {
    %c0_i32 = arith.constant 0 : i32
    %c0_i32_0 = arith.constant 0 : i32
    %c0_i32_1 = arith.constant 0 : i32
    return %c0_i32, %c0_i32_0 : i32, i32
  }
  func.func @transform_5(%arg0: i32) -> (i32, i32) {
    %c0_i32 = arith.constant 0 : i32
    %c0_i32_0 = arith.constant 0 : i32
    return %arg0, %c0_i32 : i32, i32
  }
}

</mosaic_0001>

<llo_original>
// kernel: policy_net_forward.1
$region0: #{policy_net_forward.1}
  #allocation0 [shape = 'u32[]', space=smem, size = 0x4, offset = 0x4, fixed_abs, tag = 'smem constant byte address 0x4 - core index']
  #allocation1 [shape = 'u32[144,128]{1,0:T(1,128)}', space=vmem, size = 0x12000, scoped, tag = 'internal scratch']
  %s0 = inlined_call_operand.vmem [shape: f32[8,9], index: 0, kind: input, shape index: {}]
  %s1 = inlined_call_operand.vmem [shape: bf16[32,9], index: 1, kind: input, shape index: {}]
  %s2 = inlined_call_operand.vmem [shape: f32[1,32], index: 2, kind: input, shape index: {}]
  %s3 = inlined_call_operand.vmem [shape: bf16[9,32], index: 3, kind: input, shape index: {}]
  %s4 = inlined_call_operand.vmem [shape: f32[1,9], index: 4, kind: input, shape index: {}]
  %s5 = inlined_call_operand.hbm [shape: f32[8,9], index: 5, kind: output, shape index: {}]
  %s6 = sld [smem:[#allocation0]]
  $region30: #{policy_net_forward.1} parent=0
    _
  %s8 = ssub.s32 1, %s6
  %s9 = scalar_select 0, %s8, %s6
  $region1: #{policy_net_forward.1} parent=0
    #allocation2 [shape = 'u8[4096]{0}', space=vmem, size = 0x1000, scoped, tag = 'output window, operand 0, single buffered']
    #allocation3 [shape = 's32[1]{0}', space=sflag, size = 0x4, scoped, tag = 'scoped memory for policy_net_forward.1']
    %10 = vsyncpa [#allocation3], 0
    // Predicated region
    $region2: #{policy_net_forward.1} parent=1 // pred_check
      _
    $region3: #{policy_net_forward.1} parent=1 // pred_check_branch
      %12 = sbr.rel (0) target = $region5
    $region4: #{policy_net_forward.1} parent=1 // pred_region
      _
    $region5: #{policy_net_forward.1} parent=1 // pred_fallthru
      _
    // Predicated region
    $region6: #{policy_net_forward.1} parent=1 // pred_check
      _
    $region7: #{policy_net_forward.1} parent=1 // pred_check_branch
      %14 = sbr.rel (0) target = $region9
    $region8: #{policy_net_forward.1} parent=1 // pred_region
      _
    $region9: #{policy_net_forward.1} parent=1 // pred_fallthru
      _
    // Predicated region
    $region10: #{policy_net_forward.1} parent=1 // pred_check
      _
    $region11: #{policy_net_forward.1} parent=1 // pred_check_branch
      %16 = sbr.rel (0) target = $region13
    $region12: #{policy_net_forward.1} parent=1 // pred_region
      _
    $region13: #{policy_net_forward.1} parent=1 // pred_fallthru
      _
    // Predicated region
    $region14: #{policy_net_forward.1} parent=1 // pred_check
      _
    $region15: #{policy_net_forward.1} parent=1 // pred_check_branch
      %18 = sbr.rel (0) target = $region17
    $region16: #{policy_net_forward.1} parent=1 // pred_region
      _
    $region17: #{policy_net_forward.1} parent=1 // pred_fallthru
      _
    // Predicated region
    $region18: #{policy_net_forward.1} parent=1 // pred_check
      _
    $region19: #{policy_net_forward.1} parent=1 // pred_check_branch
      %20 = sbr.rel (0) target = $region21
    $region20: #{policy_net_forward.1} parent=1 // pred_region
      _
    $region21: #{policy_net_forward.1} parent=1 // pred_fallthru
      _
    %v22 = vld [vmem:[%s0] sm:$0xff]
    %v23 = vpack.c.bf16 %v22, %v22
    %v24 = vld [vmem:[%s1] sm:$0xf]
    %v25 = vld [vmem:[%s1 + $0x4] sm:$0xf]
    %v26 = vld [vmem:[%s1 + $0x8] sm:$0xf]
    %v27 = vld [vmem:[%s1 + $0xc] sm:$0xf]
    %v28 = vld [vmem:[%s2] sm:$0x1]
    %v30 = vlaneseq
    %v31 = vshrl.u32 %v30, 7
    %v32 = vsub.s32 0, %v31
    %v33 = vrot.slane %v28, %v32
    %v39 = vunpack.c.l.b16 %v24
    %v40 = vunpack.c.l.b16 %v25
    %v41 = vunpack.c.l.b16 %v26
    %v42 = vunpack.c.l.b16 %v27
    %v43 = vpack.c.b16 %v40, %v39
    %v44 = vpack.c.b16 %v42, %v41
    %vm45 = vcmask 72704
    %v47 = vsel %vm45, %v23, 0
    %v50 = vsel %vm45, %v43, 0
    %v53 = vsel %vm45, %v44, 0
    %55 = vmatprep.subr.bf16.mxu0 0
    %56 = vmatpush1.bf16.xpose.msra.mxu0 %v50
    %57 = vmatprep.subr.bf16.mxu0 0
    %58 = vmatpush1.bf16.xpose.msra.mxu0 %v53
    %59 = vmatprep.subr.bf16.mxu0 0
    %60 = vmatpush1.bf16.xpose.msra.mxu0 0
    %61 = vmatprep.subr.bf16.mxu0 0
    %62 = vmatpush1.bf16.xpose.msra.mxu0 0
    %63 = vmatprep.subr.bf16.mxu0 0
    %64 = vmatpush1.bf16.xpose.msra.mxu0 0
    %65 = vmatprep.subr.bf16.mxu0 0
    %66 = vmatpush1.bf16.xpose.msra.mxu0 0
    %67 = vmatprep.subr.bf16.mxu0 0
    %68 = vmatpush1.bf16.xpose.msra.mxu0 0
    %69 = vmatprep.subr.bf16.mxu0 0
    %70 = vmatpush1.bf16.xpose.msra.mxu0 0
    %71 = vmatprep.subr.bf16.mxu0 0
    %72 = vmatpush1.bf16.xpose.msra.mxu0 0
    %73 = vmatprep.subr.bf16.mxu0 0
    %74 = vmatpush1.bf16.xpose.msra.mxu0 0
    %75 = vmatprep.subr.bf16.mxu0 0
    %76 = vmatpush1.bf16.xpose.msra.mxu0 0
    %77 = vmatprep.subr.bf16.mxu0 0
    %78 = vmatpush1.bf16.xpose.msra.mxu0 0
    %79 = vmatprep.subr.bf16.mxu0 0
    %80 = vmatpush1.bf16.xpose.msra.mxu0 0
    %81 = vmatprep.subr.bf16.mxu0 0
    %82 = vmatpush1.bf16.xpose.msra.mxu0 0
    %83 = vmatprep.subr.bf16.mxu0 0
    %84 = vmatpush1.bf16.xpose.msra.mxu0 0
    %85 = vmatprep.subr.bf16.mxu0 0
    %86 = vmatpush1.bf16.xpose.msra.mxu0 0
    %87 = vmatprep.mubr.bf16.mxu0 0
    %88 = vmatmul.mubr.bf16.gmra.mrb[0].mxu0 %v47
    %v89 = vpop.f32.mrb[0].mxu0
    %v90 = vadd.f32 %v33, %v89
    %v91 = vpop.f32.mrb[0].mxu0
    %v92 = vpop.f32.mrb[0].mxu0
    %v93 = vpop.f32.mrb[0].mxu0
    %94 = vdwg.mxu0
    %v95 = vmax.f32 %v90, 0.0
    %v96 = vpack.c.bf16 %v95, %v95
    %v97 = vld [vmem:[%s3] sm:$0xf]
    %v98 = vld [vmem:[%s3 + $0x4] sm:$0x1]
    %v99 = vld [vmem:[%s4] sm:$0x1]
    %v101 = vlaneseq
    %v102 = vshrl.u32 %v101, 7
    %v103 = vsub.s32 0, %v102
    %v104 = vrot.slane %v99, %v103
    %v108 = vunpack.c.l.b16 %v97
    %v109 = vunpack.c.l.b16 %v98
    %v110 = vpack.c.b16 %v109, %v108
    %vm111 = vcmask 261120
    %v113 = vsel %vm111, %v96, 0
    %v116 = vsel %vm111, %v110, 0
    %118 = vmatprep.subr.bf16.mxu0 0
    %119 = vmatpush1.bf16.xpose.msra.mxu0 %v116
    %120 = vmatprep.subr.bf16.mxu0 0
    %121 = vmatpush1.bf16.xpose.msra.mxu0 0
    %122 = vmatprep.subr.bf16.mxu0 0
    %123 = vmatpush1.bf16.xpose.msra.mxu0 0
    %124 = vmatprep.subr.bf16.mxu0 0
    %125 = vmatpush1.bf16.xpose.msra.mxu0 0
    %126 = vmatprep.subr.bf16.mxu0 0
    %127 = vmatpush1.bf16.xpose.msra.mxu0 0
    %128 = vmatprep.subr.bf16.mxu0 0
    %129 = vmatpush1.bf16.xpose.msra.mxu0 0
    %130 = vmatprep.subr.bf16.mxu0 0
    %131 = vmatpush1.bf16.xpose.msra.mxu0 0
    %132 = vmatprep.subr.bf16.mxu0 0
    %133 = vmatpush1.bf16.xpose.msra.mxu0 0
    %134 = vmatprep.subr.bf16.mxu0 0
    %135 = vmatpush1.bf16.xpose.msra.mxu0 0
    %136 = vmatprep.subr.bf16.mxu0 0
    %137 = vmatpush1.bf16.xpose.msra.mxu0 0
    %138 = vmatprep.subr.bf16.mxu0 0
    %139 = vmatpush1.bf16.xpose.msra.mxu0 0
    %140 = vmatprep.subr.bf16.mxu0 0
    %141 = vmatpush1.bf16.xpose.msra.mxu0 0
    %142 = vmatprep.subr.bf16.mxu0 0
    %143 = vmatpush1.bf16.xpose.msra.mxu0 0
    %144 = vmatprep.subr.bf16.mxu0 0
    %145 = vmatpush1.bf16.xpose.msra.mxu0 0
    %146 = vmatprep.subr.bf16.mxu0 0
    %147 = vmatpush1.bf16.xpose.msra.mxu0 0
    %148 = vmatprep.subr.bf16.mxu0 0
    %149 = vmatpush1.bf16.xpose.msra.mxu0 0
    %150 = vmatprep.mubr.bf16.mxu0 0
    %151 = vmatmul.mubr.bf16.gmra.mrb[0].mxu0 %v113
    %v152 = vpop.f32.mrb[0].mxu0
    %v153 = vadd.f32 %v104, %v152
    %v154 = vpop.f32.mrb[0].mxu0
    %v155 = vpop.f32.mrb[0].mxu0
    %v156 = vpop.f32.mrb[0].mxu0
    %157 = vdwg.mxu0
    %158 = vst.msk [vmem:[#allocation2] sm:$0xff] %vm45, %v153
    // Predicated region
    $region22: #{policy_net_forward.1} parent=1 // pred_check
      _
    $region23: #{policy_net_forward.1} parent=1 // pred_check_branch
      %160 = sbr.rel (0) target = $region25
    $region24: #{policy_net_forward.1} parent=1 // pred_region
      %s162 = ssub.s32 128, 128
      %163 = vsyncadd [#allocation3], %s162
      %s165 = sshll.u32 [#allocation2], 4
      %s166 = int_to_ptr.vmem [resolvable:$true] %s165
      %168 = dma.vmem_to_hbm [thread:$0]  %s166, 128, %s5, [#allocation3]
    $region25: #{policy_net_forward.1} parent=1 // pred_fallthru
      _
    // Predicated region
    $region26: #{policy_net_forward.1} parent=1 // pred_check
      _
    $region27: #{policy_net_forward.1} parent=1 // pred_check_branch
      %170 = sbr.rel (0) target = $region29
    $region28: #{policy_net_forward.1} parent=1 // pred_region
      %171 = dma.done [#allocation3], 128
    $region29: #{policy_net_forward.1} parent=1 // pred_fallthru
      _
    %172 = vsyncpa [#allocation3], 1

</llo_original>
